<compile_context>
chip_gen: v6e
topology: v6e:2x2x1
jax: 0.10.0
libtpu: 0.0.40
codegen_flags: <defaults>
</compile_context>

<pallas_src>
import functools

import jax
import jax.numpy as jnp
from jax.experimental import pallas as pl
from jax.experimental.pallas import tpu as pltpu


def _round_up(x: int, m: int) -> int:
    return ((x + m - 1) // m) * m


def noisy_linear_kernel(x_ref, mu_w_ref, sig_w_ref, eps_w_ref,
                        mu_b_ref, sig_b_ref, eps_b_ref,
                        o_ref, acc_ref):
    k = pl.program_id(2)

    @pl.when(k == 0)
    def _():
        # Seed the accumulator with the noisy bias (broadcast over rows) so
        # the epilogue is just a cast + store.
        noisy_b = mu_b_ref[...] + sig_b_ref[...] * eps_b_ref[...]   # [1, tn] f32
        acc_ref[...] = jnp.broadcast_to(noisy_b, acc_ref.shape)

    # Noisy weight tile, already in [K, N] layout: mu + sigma * eps (VPU).
    noisy_w = mu_w_ref[...] + sig_w_ref[...] * eps_w_ref[...]

    # Canonical [M, K] @ [K, N] on the MXU, f32 accumulation in VMEM scratch.
    acc_ref[...] += jnp.dot(
        x_ref[...], noisy_w, preferred_element_type=jnp.float32
    )

    @pl.when(k == pl.num_programs(2) - 1)
    def _():
        o_ref[...] = acc_ref[...].astype(o_ref.dtype)


@functools.partial(jax.jit, static_argnames=("tb", "tn", "tk"))
def noisy_linear(x, mu_w, sig_w, eps_w, mu_b, sig_b, eps_b,
                 *, tb: int = 128, tn: int = 256, tk: int = 512):
    """y = x @ (mu_w + sig_w*eps_w)^T + (mu_b + sig_b*eps_b).

    x:      [B, in_f]
    *_w:    [out_f, in_f]   (PyTorch linear convention)
    *_b:    [out_f]
    """
    B, in_f = x.shape
    out_f = mu_w.shape[0]
    cdt = x.dtype          # compute dtype for the MXU operands
    f32 = jnp.float32

    # Tile sizes: shrink to the (padded) problem size when it is small, cap
    # them so 3 weight tensors x 2 pipeline buffers + noisy_w temp fit VMEM
    # comfortably on all generations (incl. v7x's 64 MiB physical VMEM).
    tb = min(tb, _round_up(B, 8))
    tn = min(tn, _round_up(out_f, 128))
    tk = min(tk, _round_up(in_f, 128))

    B_p = _round_up(B, tb)
    N_p = _round_up(out_f, tn)
    K_p = _round_up(in_f, tk)

    # Zero-pad inputs; padded rows/cols contribute 0 to the result and padded
    # output columns are sliced off below.
    x_p = jnp.zeros((B_p, K_p), cdt).at[:B, :in_f].set(x.astype(cdt))

    def pad_w_t(w):  # [out_f, in_f] -> [K_p, N_p]  (pre-transposed to [K, N])
        return jnp.zeros((K_p, N_p), cdt).at[:in_f, :out_f].set(
            w.astype(cdt).T)

    def pad_b(b):    # [out_f] -> [1, N_p]  (lane-dense f32 bias row)
        return jnp.zeros((1, N_p), f32).at[0, :out_f].set(b.astype(f32))

    mu_wt, sig_wt, eps_wt = pad_w_t(mu_w), pad_w_t(sig_w), pad_w_t(eps_w)
    mu_b2, sig_b2, eps_b2 = pad_b(mu_b), pad_b(sig_b), pad_b(eps_b)

    grid = (B_p // tb, N_p // tn, K_p // tk)

    w_spec = pl.BlockSpec((tk, tn), lambda i, j, k: (k, j))
    b_spec = pl.BlockSpec((1, tn), lambda i, j, k: (0, j))

    itemsize = jnp.dtype(cdt).itemsize
    cost = pl.CostEstimate(
        flops=2 * B_p * K_p * N_p + 2 * K_p * N_p,
        transcendentals=0,
        bytes_accessed=(B_p * K_p + 3 * K_p * N_p + B_p * N_p) * itemsize
        + 3 * N_p * 4,
    )

    y_p = pl.pallas_call(
        noisy_linear_kernel,
        out_shape=jax.ShapeDtypeStruct((B_p, N_p), x.dtype),
        grid=grid,
        in_specs=[
            pl.BlockSpec((tb, tk), lambda i, j, k: (i, k)),   # x
            w_spec,                                           # mu_w^T
            w_spec,                                           # sigma_w^T
            w_spec,                                           # eps_w^T
            b_spec,                                           # mu_b
            b_spec,                                           # sigma_b
            b_spec,                                           # eps_b
        ],
        out_specs=pl.BlockSpec((tb, tn), lambda i, j, k: (i, j)),
        scratch_shapes=[pltpu.VMEM((tb, tn), jnp.float32)],
        compiler_params=pltpu.CompilerParams(
            dimension_semantics=("parallel", "parallel", "arbitrary"),
            vmem_limit_bytes=32 * 1024 * 1024,
        ),
        cost_estimate=cost,
    )(x_p, mu_wt, sig_wt, eps_wt, mu_b2, sig_b2, eps_b2)

    return y_p[:B, :out_f]


def make_noise(key, shape, bound):
    # torch: uniform_(-bound, bound) then sign(u) * sqrt(|u|)
    u = jax.random.uniform(key, shape, minval=-bound, maxval=bound,
                           dtype=jnp.float32)
    return jnp.sign(u) * jnp.sqrt(jnp.abs(u))


if __name__ == "__main__":
    input_features = 32
    output_features = 64
    batch = 8
    sigma = 0.017
    bound = (3.0 / input_features) ** 0.5

    key = jax.random.PRNGKey(0)
    k_x, k_mw, k_mb, k_ew, k_eb = jax.random.split(key, 5)

    # Deterministic parameter initialization (matches __init__ semantics).
    mu_weight = jax.random.uniform(k_mw, (output_features, input_features),
                                   minval=-bound, maxval=bound,
                                   dtype=jnp.float32)
    mu_bias = jax.random.uniform(k_mb, (output_features,),
                                 minval=-bound, maxval=bound,
                                 dtype=jnp.float32)
    sigma_weight = jnp.full((output_features, input_features), sigma,
                            dtype=jnp.float32)
    sigma_bias = jnp.full((output_features,), sigma, dtype=jnp.float32)

    # sample_noise(): eps = sign(u) * sqrt(|u|), u ~ U(-bound, bound)
    epsilon_weight = make_noise(k_ew, (output_features, input_features), bound)
    epsilon_bias = make_noise(k_eb, (output_features,), bound)

    x = jax.random.normal(k_x, (batch, input_features), dtype=jnp.float32)

    # Training-mode forward (noisy path).
    y = noisy_linear(x, mu_weight, sigma_weight, epsilon_weight,
                     mu_bias, sigma_bias, epsilon_bias)
    y = jax.block_until_ready(y)

    # Pure-JAX reference check.
    noisy_w = mu_weight + sigma_weight * epsilon_weight
    noisy_b = mu_bias + sigma_bias * epsilon_bias
    y_ref = x @ noisy_w.T + noisy_b
    assert y.shape == (batch, output_features)
    assert jnp.allclose(y, y_ref, atol=1e-5, rtol=1e-5)

    print("KERNEL_OK")
</pallas_src>

<mosaic_0001>
module attributes {stable_mosaic.version = 11 : i64} {
  func.func @noisy_linear_kernel(%arg0: i32, %arg1: i32, %arg2: i32, %arg3: memref<8x128xf32, #tpu.memory_space<vmem>>, %arg4: memref<128x128xf32, #tpu.memory_space<vmem>>, %arg5: memref<128x128xf32, #tpu.memory_space<vmem>>, %arg6: memref<128x128xf32, #tpu.memory_space<vmem>>, %arg7: memref<1x128xf32, #tpu.memory_space<vmem>>, %arg8: memref<1x128xf32, #tpu.memory_space<vmem>>, %arg9: memref<1x128xf32, #tpu.memory_space<vmem>>, %arg10: memref<8x128xf32, #tpu.memory_space<vmem>>, %arg11: memref<8x128xf32, #tpu.memory_space<vmem>>) attributes {dimension_semantics = [#tpu.dimension_semantics<parallel>, #tpu.dimension_semantics<parallel>, #tpu.dimension_semantics<arbitrary>], iteration_bounds = array<i64: 1, 1, 1>, scalar_prefetch = 0 : i64, scratch_operands = 1 : i64, tpu.core_type = #tpu.core_type<tc>, window_params = [{transform_indices = @transform_0, window_bounds = array<i64: 8, 128>}, {transform_indices = @transform_1, window_bounds = array<i64: 128, 128>}, {transform_indices = @transform_2, window_bounds = array<i64: 128, 128>}, {transform_indices = @transform_3, window_bounds = array<i64: 128, 128>}, {transform_indices = @transform_4, window_bounds = array<i64: 1, 128>}, {transform_indices = @transform_5, window_bounds = array<i64: 1, 128>}, {transform_indices = @transform_6, window_bounds = array<i64: 1, 128>}, {transform_indices = @transform_7, window_bounds = array<i64: 8, 128>}]} {
    %c0_i32 = arith.constant 0 : i32
    %0 = arith.cmpi eq, %arg2, %c0_i32 : i32
    %1 = arith.extui %0 : i1 to i32
    %c0_i32_0 = arith.constant 0 : i32
    %2 = arith.cmpi ne, %1, %c0_i32_0 : i32
    scf.if %2 {
      %c0_14 = arith.constant 0 : index
      %c0_15 = arith.constant 0 : index
      %16 = vector.load %arg7[%c0_14, %c0_15] : memref<1x128xf32, #tpu.memory_space<vmem>>, vector<1x128xf32>
      %c0_16 = arith.constant 0 : index
      %c0_17 = arith.constant 0 : index
      %17 = vector.load %arg8[%c0_16, %c0_17] : memref<1x128xf32, #tpu.memory_space<vmem>>, vector<1x128xf32>
      %c0_18 = arith.constant 0 : index
      %c0_19 = arith.constant 0 : index
      %18 = vector.load %arg9[%c0_18, %c0_19] : memref<1x128xf32, #tpu.memory_space<vmem>>, vector<1x128xf32>
      %19 = arith.mulf %17, %18 : vector<1x128xf32>
      %20 = arith.addf %16, %19 : vector<1x128xf32>
      %21 = vector.shape_cast %20 : vector<1x128xf32> to vector<1x128xf32>
      %22 = vector.broadcast %21 : vector<1x128xf32> to vector<8x128xf32>
      %c0_20 = arith.constant 0 : index
      %c0_21 = arith.constant 0 : index
      %23 = vector.load %arg11[%c0_20, %c0_21] : memref<8x128xf32, #tpu.memory_space<vmem>>, vector<8x128xf32>
      tpu.vector_store %arg11[%c0_20, %c0_21], %22 {strides = array<i32>} : memref<8x128xf32, #tpu.memory_space<vmem>>, vector<8x128xf32>,
    } else {
    }
    %c0 = arith.constant 0 : index
    %c0_1 = arith.constant 0 : index
    %3 = vector.load %arg4[%c0, %c0_1] : memref<128x128xf32, #tpu.memory_space<vmem>>, vector<128x128xf32>
    %c0_2 = arith.constant 0 : index
    %c0_3 = arith.constant 0 : index
    %4 = vector.load %arg5[%c0_2, %c0_3] : memref<128x128xf32, #tpu.memory_space<vmem>>, vector<128x128xf32>
    %c0_4 = arith.constant 0 : index
    %c0_5 = arith.constant 0 : index
    %5 = vector.load %arg6[%c0_4, %c0_5] : memref<128x128xf32, #tpu.memory_space<vmem>>, vector<128x128xf32>
    %6 = arith.mulf %4, %5 : vector<128x128xf32>
    %7 = arith.addf %3, %6 : vector<128x128xf32>
    %c0_6 = arith.constant 0 : index
    %c0_7 = arith.constant 0 : index
    %8 = vector.load %arg11[%c0_6, %c0_7] : memref<8x128xf32, #tpu.memory_space<vmem>>, vector<8x128xf32>
    %c0_8 = arith.constant 0 : index
    %c0_9 = arith.constant 0 : index
    %9 = vector.load %arg3[%c0_8, %c0_9] : memref<8x128xf32, #tpu.memory_space<vmem>>, vector<8x128xf32>
    %cst = arith.constant dense<0.000000e+00> : vector<8x128xf32>
    %10 = tpu.matmul %9, %7, %cst {dimension_numbers = #tpu.dot_dimension_numbers<[1], [0], [0], [1], [0, 0, 1, 1], [], []>} : vector<8x128xf32>, vector<128x128xf32>, vector<8x128xf32> -> vector<8x128xf32>
    %11 = arith.addf %8, %10 : vector<8x128xf32>
    %c0_10 = arith.constant 0 : index
    %c0_11 = arith.constant 0 : index
    %12 = vector.load %arg11[%c0_10, %c0_11] : memref<8x128xf32, #tpu.memory_space<vmem>>, vector<8x128xf32>
    tpu.vector_store %arg11[%c0_10, %c0_11], %11 {strides = array<i32>} : memref<8x128xf32, #tpu.memory_space<vmem>>, vector<8x128xf32>,
    %c0_i32_12 = arith.constant 0 : i32
    %13 = arith.cmpi eq, %arg2, %c0_i32_12 : i32
    %14 = arith.extui %13 : i1 to i32
    %c0_i32_13 = arith.constant 0 : i32
    %15 = arith.cmpi ne, %14, %c0_i32_13 : i32
    scf.if %15 {
      %c0_14 = arith.constant 0 : index
      %c0_15 = arith.constant 0 : index
      %16 = vector.load %arg11[%c0_14, %c0_15] : memref<8x128xf32, #tpu.memory_space<vmem>>, vector<8x128xf32>
      %c0_16 = arith.constant 0 : index
      %c0_17 = arith.constant 0 : index
      %17 = vector.load %arg10[%c0_16, %c0_17] : memref<8x128xf32, #tpu.memory_space<vmem>>, vector<8x128xf32>
      tpu.vector_store %arg10[%c0_16, %c0_17], %16 {strides = array<i32>} : memref<8x128xf32, #tpu.memory_space<vmem>>, vector<8x128xf32>,
    } else {
    }
    return
  }
  func.func @transform_0(%arg0: i32, %arg1: i32, %arg2: i32) -> (i32, i32) {
    %c0_i32 = arith.constant 0 : i32
    return %arg0, %arg2 : i32, i32
  }
  func.func @transform_1(%arg0: i32, %arg1: i32, %arg2: i32) -> (i32, i32) {
    %c0_i32 = arith.constant 0 : i32
    return %arg2, %arg1 : i32, i32
  }
  func.func @transform_2(%arg0: i32, %arg1: i32, %arg2: i32) -> (i32, i32) {
    %c0_i32 = arith.constant 0 : i32
    return %arg2, %arg1 : i32, i32
  }
  func.func @transform_3(%arg0: i32, %arg1: i32, %arg2: i32) -> (i32, i32) {
    %c0_i32 = arith.constant 0 : i32
    return %arg2, %arg1 : i32, i32
  }
  func.func @transform_4(%arg0: i32, %arg1: i32, %arg2: i32) -> (i32, i32) {
    %c0_i32 = arith.constant 0 : i32
    %c0_i32_0 = arith.constant 0 : i32
    return %c0_i32, %arg1 : i32, i32
  }
  func.func @transform_5(%arg0: i32, %arg1: i32, %arg2: i32) -> (i32, i32) {
    %c0_i32 = arith.constant 0 : i32
    %c0_i32_0 = arith.constant 0 : i32
    return %c0_i32, %arg1 : i32, i32
  }
  func.func @transform_6(%arg0: i32, %arg1: i32, %arg2: i32) -> (i32, i32) {
    %c0_i32 = arith.constant 0 : i32
    %c0_i32_0 = arith.constant 0 : i32
    return %c0_i32, %arg1 : i32, i32
  }
  func.func @transform_7(%arg0: i32, %arg1: i32, %arg2: i32) -> (i32, i32) {
    %c0_i32 = arith.constant 0 : i32
    return %arg0, %arg1 : i32, i32
  }
}

</mosaic_0001>

<llo_original>
// kernel: noisy_linear.1
$region0: #{noisy_linear.1}
  #allocation0 [shape = 'u32[]', space=smem, size = 0x4, offset = 0x4, fixed_abs, tag = 'smem constant byte address 0x4 - core index']
  #allocation1 [shape = 'u32[144,128]{1,0:T(1,128)}', space=vmem, size = 0x12000, scoped, tag = 'internal scratch']
  #allocation2 [shape = 'f32[8,128]{1,0:T(8,128)}', space=vmem, size = 0x1000, scoped, tag = 'scratch operand']
  %s0 = inlined_call_operand.vmem [shape: f32[8,128], index: 0, kind: input, shape index: {}]
  %s1 = inlined_call_operand.vmem [shape: f32[128,128], index: 1, kind: input, shape index: {}]
  %s2 = inlined_call_operand.vmem [shape: f32[128,128], index: 2, kind: input, shape index: {}]
  %s3 = inlined_call_operand.vmem [shape: f32[128,128], index: 3, kind: input, shape index: {}]
  %s4 = inlined_call_operand.vmem [shape: f32[1,128], index: 4, kind: input, shape index: {}]
  %s5 = inlined_call_operand.vmem [shape: f32[1,128], index: 5, kind: input, shape index: {}]
  %s6 = inlined_call_operand.vmem [shape: f32[1,128], index: 6, kind: input, shape index: {}]
  %s7 = inlined_call_operand.hbm [shape: f32[8,128], index: 7, kind: output, shape index: {}]
  %s8 = sld [smem:[#allocation0]]
  $region46: #{noisy_linear.1} parent=0
    _
  %s10 = ssub.s32 1, %s8
  %s11 = scalar_select 0, %s10, %s8
  $region1: #{noisy_linear.1} parent=0
    #allocation3 [shape = 'u8[4096]{0}', space=vmem, size = 0x1000, scoped, tag = 'output window, operand 0, single buffered']
    #allocation4 [shape = 's32[1]{0}', space=sflag, size = 0x4, scoped, tag = 'scoped memory for noisy_linear.1']
    %12 = vsyncpa [#allocation4], 0
    // Predicated region
    $region2: #{noisy_linear.1} parent=1 // pred_check
      _
    $region3: #{noisy_linear.1} parent=1 // pred_check_branch
      %14 = sbr.rel (0) target = $region5
    $region4: #{noisy_linear.1} parent=1 // pred_region
      _
    $region5: #{noisy_linear.1} parent=1 // pred_fallthru
      _
    // Predicated region
    $region6: #{noisy_linear.1} parent=1 // pred_check
      _
    $region7: #{noisy_linear.1} parent=1 // pred_check_branch
      %16 = sbr.rel (0) target = $region9
    $region8: #{noisy_linear.1} parent=1 // pred_region
      _
    $region9: #{noisy_linear.1} parent=1 // pred_fallthru
      _
    // Predicated region
    $region10: #{noisy_linear.1} parent=1 // pred_check
      _
    $region11: #{noisy_linear.1} parent=1 // pred_check_branch
      %18 = sbr.rel (0) target = $region13
    $region12: #{noisy_linear.1} parent=1 // pred_region
      _
    $region13: #{noisy_linear.1} parent=1 // pred_fallthru
      _
    // Predicated region
    $region14: #{noisy_linear.1} parent=1 // pred_check
      _
    $region15: #{noisy_linear.1} parent=1 // pred_check_branch
      %20 = sbr.rel (0) target = $region17
    $region16: #{noisy_linear.1} parent=1 // pred_region
      _
    $region17: #{noisy_linear.1} parent=1 // pred_fallthru
      _
    // Predicated region
    $region18: #{noisy_linear.1} parent=1 // pred_check
      _
    $region19: #{noisy_linear.1} parent=1 // pred_check_branch
      %22 = sbr.rel (0) target = $region21
    $region20: #{noisy_linear.1} parent=1 // pred_region
      _
    $region21: #{noisy_linear.1} parent=1 // pred_fallthru
      _
    // Predicated region
    $region22: #{noisy_linear.1} parent=1 // pred_check
      _
    $region23: #{noisy_linear.1} parent=1 // pred_check_branch
      %24 = sbr.rel (0) target = $region25
    $region24: #{noisy_linear.1} parent=1 // pred_region
      _
    $region25: #{noisy_linear.1} parent=1 // pred_fallthru
      _
    // Predicated region
    $region26: #{noisy_linear.1} parent=1 // pred_check
      _
    $region27: #{noisy_linear.1} parent=1 // pred_check_branch
      %26 = sbr.rel (0) target = $region29
    $region28: #{noisy_linear.1} parent=1 // pred_region
      _
    $region29: #{noisy_linear.1} parent=1 // pred_fallthru
      _
    %p27 = scmp.eq.s32.totalorder 0, 0
    // Predicated region
    $region30: #{noisy_linear.1} parent=1 // pred_check
      %p28 = pneg %p27
    $region31: #{noisy_linear.1} parent=1 // pred_check_branch
      %30 = sbr.rel (%p28) target = $region33
    $region32: #{noisy_linear.1} parent=1 // pred_region
      %v31 = vld [vmem:[%s4] sm:$0x1]
      %v32 = vld [vmem:[%s5] sm:$0x1]
      %v33 = vld [vmem:[%s6] sm:$0x1]
      %v34 = vmul.f32 %v32, %v33
      %v35 = vadd.f32 %v31, %v34
      %v37 = vlaneseq
      %v38 = vshrl.u32 %v37, 7
      %v39 = vsub.s32 0, %v38
      %v40 = vrot.slane %v35, %v39
      %42 = vst [vmem:[#allocation2] sm:$0xff] %v40
    $region33: #{noisy_linear.1} parent=1 // pred_fallthru
      _
    %v43 = vld [vmem:[%s1] sm:$0xff]
    %v44 = vld [vmem:[%s1 + $0x8] sm:$0xff]
    %v45 = vld [vmem:[%s1 + $0x10] sm:$0xff]
    %v46 = vld [vmem:[%s1 + $0x18] sm:$0xff]
    %v47 = vld [vmem:[%s1 + $0x20] sm:$0xff]
    %v48 = vld [vmem:[%s1 + $0x28] sm:$0xff]
    %v49 = vld [vmem:[%s1 + $0x30] sm:$0xff]
    %v50 = vld [vmem:[%s1 + $0x38] sm:$0xff]
    %v51 = vld [vmem:[%s1 + $0x40] sm:$0xff]
    %v52 = vld [vmem:[%s1 + $0x48] sm:$0xff]
    %v53 = vld [vmem:[%s1 + $0x50] sm:$0xff]
    %v54 = vld [vmem:[%s1 + $0x58] sm:$0xff]
    %v55 = vld [vmem:[%s1 + $0x60] sm:$0xff]
    %v56 = vld [vmem:[%s1 + $0x68] sm:$0xff]
    %v57 = vld [vmem:[%s1 + $0x70] sm:$0xff]
    %v58 = vld [vmem:[%s1 + $0x78] sm:$0xff]
    %v59 = vld [vmem:[%s2] sm:$0xff]
    %v60 = vld [vmem:[%s2 + $0x8] sm:$0xff]
    %v61 = vld [vmem:[%s2 + $0x10] sm:$0xff]
    %v62 = vld [vmem:[%s2 + $0x18] sm:$0xff]
    %v63 = vld [vmem:[%s2 + $0x20] sm:$0xff]
    %v64 = vld [vmem:[%s2 + $0x28] sm:$0xff]
    %v65 = vld [vmem:[%s2 + $0x30] sm:$0xff]
    %v66 = vld [vmem:[%s2 + $0x38] sm:$0xff]
    %v67 = vld [vmem:[%s2 + $0x40] sm:$0xff]
    %v68 = vld [vmem:[%s2 + $0x48] sm:$0xff]
    %v69 = vld [vmem:[%s2 + $0x50] sm:$0xff]
    %v70 = vld [vmem:[%s2 + $0x58] sm:$0xff]
    %v71 = vld [vmem:[%s2 + $0x60] sm:$0xff]
    %v72 = vld [vmem:[%s2 + $0x68] sm:$0xff]
    %v73 = vld [vmem:[%s2 + $0x70] sm:$0xff]
    %v74 = vld [vmem:[%s2 + $0x78] sm:$0xff]
    %v75 = vld [vmem:[%s3] sm:$0xff]
    %v76 = vld [vmem:[%s3 + $0x8] sm:$0xff]
    %v77 = vld [vmem:[%s3 + $0x10] sm:$0xff]
    %v78 = vld [vmem:[%s3 + $0x18] sm:$0xff]
    %v79 = vld [vmem:[%s3 + $0x20] sm:$0xff]
    %v80 = vld [vmem:[%s3 + $0x28] sm:$0xff]
    %v81 = vld [vmem:[%s3 + $0x30] sm:$0xff]
    %v82 = vld [vmem:[%s3 + $0x38] sm:$0xff]
    %v83 = vld [vmem:[%s3 + $0x40] sm:$0xff]
    %v84 = vld [vmem:[%s3 + $0x48] sm:$0xff]
    %v85 = vld [vmem:[%s3 + $0x50] sm:$0xff]
    %v86 = vld [vmem:[%s3 + $0x58] sm:$0xff]
    %v87 = vld [vmem:[%s3 + $0x60] sm:$0xff]
    %v88 = vld [vmem:[%s3 + $0x68] sm:$0xff]
    %v89 = vld [vmem:[%s3 + $0x70] sm:$0xff]
    %v90 = vld [vmem:[%s3 + $0x78] sm:$0xff]
    %v91 = vmul.f32 %v59, %v75
    %v92 = vmul.f32 %v60, %v76
    %v93 = vmul.f32 %v61, %v77
    %v94 = vmul.f32 %v62, %v78
    %v95 = vmul.f32 %v63, %v79
    %v96 = vmul.f32 %v64, %v80
    %v97 = vmul.f32 %v65, %v81
    %v98 = vmul.f32 %v66, %v82
    %v99 = vmul.f32 %v67, %v83
    %v100 = vmul.f32 %v68, %v84
    %v101 = vmul.f32 %v69, %v85
    %v102 = vmul.f32 %v70, %v86
    %v103 = vmul.f32 %v71, %v87
    %v104 = vmul.f32 %v72, %v88
    %v105 = vmul.f32 %v73, %v89
    %v106 = vmul.f32 %v74, %v90
    %v107 = vadd.f32 %v43, %v91
    %v108 = vadd.f32 %v44, %v92
    %v109 = vadd.f32 %v45, %v93
    %v110 = vadd.f32 %v46, %v94
    %v111 = vadd.f32 %v47, %v95
    %v112 = vadd.f32 %v48, %v96
    %v113 = vadd.f32 %v49, %v97
    %v114 = vadd.f32 %v50, %v98
    %v115 = vadd.f32 %v51, %v99
    %v116 = vadd.f32 %v52, %v100
    %v117 = vadd.f32 %v53, %v101
    %v118 = vadd.f32 %v54, %v102
    %v119 = vadd.f32 %v55, %v103
    %v120 = vadd.f32 %v56, %v104
    %v121 = vadd.f32 %v57, %v105
    %v122 = vadd.f32 %v58, %v106
    %v123 = vld [vmem:[#allocation2] sm:$0xff]
    %v124 = vld [vmem:[%s0] sm:$0xff]
    %125 = vmatprep.subr.mxu0 0.0
    %126 = vmatpush1.msra.mxu0 %v122
    %127 = vmatprep.subr.mxu0 0.0
    %128 = vmatpush1.msra.mxu0 %v121
    %129 = vmatprep.subr.mxu0 0.0
    %130 = vmatpush1.msra.mxu0 %v120
    %131 = vmatprep.subr.mxu0 0.0
    %132 = vmatpush1.msra.mxu0 %v119
    %133 = vmatprep.subr.mxu0 0.0
    %134 = vmatpush1.msra.mxu0 %v118
    %135 = vmatprep.subr.mxu0 0.0
    %136 = vmatpush1.msra.mxu0 %v117
    %137 = vmatprep.subr.mxu0 0.0
    %138 = vmatpush1.msra.mxu0 %v116
    %139 = vmatprep.subr.mxu0 0.0
    %140 = vmatpush1.msra.mxu0 %v115
    %141 = vmatprep.subr.mxu0 0.0
    %142 = vmatpush1.msra.mxu0 %v114
    %143 = vmatprep.subr.mxu0 0.0
    %144 = vmatpush1.msra.mxu0 %v113
    %145 = vmatprep.subr.mxu0 0.0
    %146 = vmatpush1.msra.mxu0 %v112
    %147 = vmatprep.subr.mxu0 0.0
    %148 = vmatpush1.msra.mxu0 %v111
    %149 = vmatprep.subr.mxu0 0.0
    %150 = vmatpush1.msra.mxu0 %v110
    %151 = vmatprep.subr.mxu0 0.0
    %152 = vmatpush1.msra.mxu0 %v109
    %153 = vmatprep.subr.mxu0 0.0
    %154 = vmatpush1.msra.mxu0 %v108
    %155 = vmatprep.subr.mxu0 0.0
    %156 = vmatpush1.msra.mxu0 %v107
    %157 = vmatprep.subr.mxu0 0.0
    %158 = vmatpush2.msra.mxu0 0.0
    %159 = vmatprep.subr.mxu0 0.0
    %160 = vmatpush2.msra.mxu0 0.0
    %161 = vmatprep.subr.mxu0 0.0
    %162 = vmatpush2.msra.mxu0 0.0
    %163 = vmatprep.subr.mxu0 0.0
    %164 = vmatpush2.msra.mxu0 0.0
    %165 = vmatprep.subr.mxu0 0.0
    %166 = vmatpush2.msra.mxu0 0.0
    %167 = vmatprep.subr.mxu0 0.0
    %168 = vmatpush2.msra.mxu0 0.0
    %169 = vmatprep.subr.mxu0 0.0
    %170 = vmatpush2.msra.mxu0 0.0
    %171 = vmatprep.subr.mxu0 0.0
    %172 = vmatpush2.msra.mxu0 0.0
    %173 = vmatprep.subr.mxu0 0.0
    %174 = vmatpush2.msra.mxu0 0.0
    %175 = vmatprep.subr.mxu0 0.0
    %176 = vmatpush2.msra.mxu0 0.0
    %177 = vmatprep.subr.mxu0 0.0
    %178 = vmatpush2.msra.mxu0 0.0
    %179 = vmatprep.subr.mxu0 0.0
    %180 = vmatpush2.msra.mxu0 0.0
    %181 = vmatprep.subr.mxu0 0.0
    %182 = vmatpush2.msra.mxu0 0.0
    %183 = vmatprep.subr.mxu0 0.0
    %184 = vmatpush2.msra.mxu0 0.0
    %185 = vmatprep.subr.mxu0 0.0
    %186 = vmatpush2.msra.mxu0 0.0
    %187 = vmatprep.subr.mxu0 0.0
    %188 = vmatpush2.msra.mxu0 0.0
    %189 = vmatprep.mubr.f32.mxu0 0.0
    %190 = vmatmul.mubr.f32.gmra.mxu0 %v124
    %v191 = vpop.f32.mrf.mxu0
    %v192 = vadd.f32 0.0, %v191
    %v193 = vpop.f32.mrf.mxu0
    %194 = vdwg.mxu0
    %v195 = vadd.f32 %v123, %v192
    %196 = vst [vmem:[#allocation2] sm:$0xff] %v195
    // Predicated region
    $region34: #{noisy_linear.1} parent=1 // pred_check
      %p197 = pneg %p27
    $region35: #{noisy_linear.1} parent=1 // pred_check_branch
      %199 = sbr.rel (%p197) target = $region37
    $region36: #{noisy_linear.1} parent=1 // pred_region
      %v200 = vld [vmem:[#allocation2] sm:$0xff]
      %201 = vst [vmem:[#allocation3] sm:$0xff] %v200
    $region37: #{noisy_linear.1} parent=1 // pred_fallthru
      _
    // Predicated region
    $region38: #{noisy_linear.1} parent=1 // pred_check
      _
    $region39: #{noisy_linear.1} parent=1 // pred_check_branch
      %203 = sbr.rel (0) target = $region41
    $region40: #{noisy_linear.1} parent=1 // pred_region
      %s205 = ssub.s32 128, 128
      %206 = vsyncadd [#allocation4], %s205
      %s208 = sshll.u32 [#allocation3], 4
      %s209 = int_to_ptr.vmem [resolvable:$true] %s208
      %211 = dma.vmem_to_hbm [thread:$0]  %s209, 128, %s7, [#allocation4]
    $region41: #{noisy_linear.1} parent=1 // pred_fallthru
      _
    // Predicated region
    $region42: #{noisy_linear.1} parent=1 // pred_check
      _
    $region43: #{noisy_linear.1} parent=1 // pred_check_branch
      %213 = sbr.rel (0) target = $region45
    $region44: #{noisy_linear.1} parent=1 // pred_region
      %214 = dma.done [#allocation4], 128
    $region45: #{noisy_linear.1} parent=1 // pred_fallthru
      _
    %215 = vsyncpa [#allocation4], 1

</llo_original>
